<compile_context>
chip_gen: v7x
topology: tpu7x:2x2x1
jax: 0.10.0
libtpu: 0.0.40
codegen_flags: <defaults>
</compile_context>

<pallas_src>
import functools

import jax
import jax.numpy as jnp
from jax.experimental import pallas as pl
from jax.experimental.pallas import tpu as pltpu


def _round_up(n, m):
    return ((n + m - 1) // m) * m


def _sublane_multiple(dtype):
    """Dtype-aware sublane packing: 8 rows (f32), 16 (bf16), 32 (int8/fp8)."""
    itemsize = jnp.dtype(dtype).itemsize
    return max(8, 32 // max(1, itemsize))


def _make_pos_emb_kernel(chunks):
    """Kernel that DMA-copies weight[:seq_len] straight HBM -> HBM.

    `chunks` is a static tuple of (row_start, row_count); one chunk is copied
    per grid step so v7x can shard the copy across both TensorCores.
    """

    def kernel(w_ref, o_ref, sem):
        for step, (start, count) in enumerate(chunks):

            @pl.when(pl.program_id(0) == step)
            def _(start=start, count=count):
                cp = pltpu.make_async_copy(
                    w_ref.at[pl.ds(start, count), :],
                    o_ref.at[pl.ds(start, count), :],
                    sem,
                )
                cp.start()
                cp.wait()

    return kernel


@functools.partial(jax.jit, static_argnames=("seq_len",))
def _pos_emb_call(weight, seq_len):
    max_len, dim = weight.shape
    sub = _sublane_multiple(weight.dtype)

    # Split into (at most) two sublane-aligned row chunks: lets v7x drive both
    # TensorCores' DMA paths; on v5e/v6e the chunks run sequentially (cheap).
    if seq_len >= 2 * sub:
        first = min(_round_up(seq_len // 2, sub), seq_len)
        if seq_len - first > 0:
            chunks = ((0, first), (first, seq_len - first))
        else:
            chunks = ((0, seq_len),)
    else:
        chunks = ((0, seq_len),)

    kernel = _make_pos_emb_kernel(chunks)

    return pl.pallas_call(
        kernel,
        out_shape=jax.ShapeDtypeStruct((seq_len, dim), weight.dtype),
        grid=(len(chunks),),
        in_specs=[pl.BlockSpec(memory_space=pl.ANY)],   # raw HBM ref, no auto-DMA
        out_specs=pl.BlockSpec(memory_space=pl.ANY),    # raw HBM ref, DMA'd manually
        scratch_shapes=[pltpu.SemaphoreType.DMA(())],
        compiler_params=pltpu.CompilerParams(
            dimension_semantics=("parallel",),
        ),
    )(weight)


class LearnablePositionalEmbedding:
    """JAX/Pallas port of the PyTorch module."""

    def __init__(self, dim, max_len=512, key=None):
        if key is None:
            key = jax.random.PRNGKey(0)
        # nn.Embedding default init: N(0, 1)
        self.weight = jax.random.normal(key, (max_len, dim), dtype=jnp.float32)
        # registered buffer `range` (kept for parity with the PyTorch module)
        self.range = jnp.arange(max_len, dtype=jnp.int32)
        self.dim = dim
        self.max_len = max_len

    def __call__(self, x):
        seq_len = x.shape[-2]
        return _pos_emb_call(self.weight, seq_len)


if __name__ == "__main__":
    key = jax.random.PRNGKey(0)
    k_w, k_x = jax.random.split(key)

    dim, max_len = 32, 64
    batch, seq_len = 2, 8

    module = LearnablePositionalEmbedding(dim=dim, max_len=max_len, key=k_w)

    # x only contributes its seq dimension (axis -2), exactly like PyTorch.
    x = jax.random.normal(k_x, (batch, seq_len, dim), dtype=jnp.float32)

    out = module(x)
    out = jax.block_until_ready(out)

    ref = module.weight[:seq_len]
    assert out.shape == (seq_len, dim), out.shape
    assert out.dtype == jnp.float32
    assert jnp.allclose(out, ref), "mismatch vs reference (seq_len=8)"

    # Extra check: seq_len == max_len exercises the two-chunk (dual-DMA) path.
    x_full = jax.random.normal(k_x, (batch, max_len, dim), dtype=jnp.float32)
    out_full = jax.block_until_ready(module(x_full))
    assert jnp.allclose(out_full, module.weight), "mismatch vs reference (full)"

    print("KERNEL_OK")
</pallas_src>

<mosaic_0001>
module attributes {stable_mosaic.version = 11 : i64} {
  func.func @kernel(%arg0: i32, %arg1: memref<64x32xf32, #tpu.memory_space<any>>, %arg2: memref<8x32xf32, #tpu.memory_space<any>>, %arg3: memref<!tpu.dma_semaphore, #tpu.memory_space<semaphore_mem>>) attributes {dimension_semantics = [#tpu.dimension_semantics<parallel>], iteration_bounds = array<i64: 1>, scalar_prefetch = 0 : i64, scratch_operands = 1 : i64, tpu.core_type = #tpu.core_type<tc>, window_params = [{}, {}]} {
    %c0_i32 = arith.constant 0 : i32
    %0 = arith.cmpi eq, %arg0, %c0_i32 : i32
    %1 = arith.extui %0 : i1 to i32
    %c0_i32_0 = arith.constant 0 : i32
    %2 = arith.cmpi ne, %1, %c0_i32_0 : i32
    scf.if %2 {
      %c0_i32_1 = arith.constant 0 : i32
      %c0_i32_2 = arith.constant 0 : i32
      %3 = tpu.memref_slice %arg1[%c0_i32_1, %c0_i32_2] : memref<64x32xf32, #tpu.memory_space<any>> -> memref<8x32xf32, #tpu.memory_space<any>>
      %c0_i32_3 = arith.constant 0 : i32
      %c0_i32_4 = arith.constant 0 : i32
      %4 = tpu.memref_slice %arg2[%c0_i32_3, %c0_i32_4] : memref<8x32xf32, #tpu.memory_space<any>> -> memref<8x32xf32, #tpu.memory_space<any>>
      tpu.enqueue_dma source(%3 : memref<8x32xf32, #tpu.memory_space<any>>) target(%4 : memref<8x32xf32, #tpu.memory_space<any>>) target_semaphore(%arg3 : memref<!tpu.dma_semaphore, #tpu.memory_space<semaphore_mem>>)
      %c0_i32_5 = arith.constant 0 : i32
      %c0_i32_6 = arith.constant 0 : i32
      %5 = tpu.memref_slice %arg1[%c0_i32_5, %c0_i32_6] : memref<64x32xf32, #tpu.memory_space<any>> -> memref<8x32xf32, #tpu.memory_space<any>>
      %c0_i32_7 = arith.constant 0 : i32
      %c0_i32_8 = arith.constant 0 : i32
      %6 = tpu.memref_slice %arg2[%c0_i32_7, %c0_i32_8] : memref<8x32xf32, #tpu.memory_space<any>> -> memref<8x32xf32, #tpu.memory_space<any>>
      tpu.wait_dma2 semaphore(%arg3 : memref<!tpu.dma_semaphore, #tpu.memory_space<semaphore_mem>>) src(%5 : memref<8x32xf32, #tpu.memory_space<any>>) dst(%6 : memref<8x32xf32, #tpu.memory_space<any>>)
    } else {
    }
    return
  }
}

</mosaic_0001>

<llo_original>
// kernel: _pos_emb_call.1
$region0: #{_pos_emb_call.1}
  #allocation0 [shape = 'u32[]', space=smem, size = 0x4, offset = 0x4, fixed_abs, tag = 'smem constant byte address 0x4 - core index']
  #allocation1 [shape = 'u32[144,128]{1,0:T(1,128)}', space=vmem, size = 0x12000, scoped, tag = 'internal scratch']
  #allocation2 [shape = 's32[1]{0}', space=sflag, size = 0x4, scoped, tag = 'scratch operand']
  #allocation3 [shape = 's32[]', space=sflag, size = 0x4, offset = 0, fixed_abs, tag = 'sflag constant byte address 0x0 - dummy sync flag']
  #allocation4 [shape = 's32[]', space=sflag, size = 0x4, offset = 0, fixed_abs, tag = 'sflag constant byte address 0x0 - dummy sync flag']
  #allocation5 [shape = 'u32[]', space=smem, size = 0x4, offset = 0x44, fixed_abs, tag = 'smem constant byte address 0x44 - assertion arg 0']
  #allocation6 [shape = 'u32[]', space=smem, size = 0x4, offset = 0x48, fixed_abs, tag = 'smem constant byte address 0x48 - assertion arg 1']
  %s0 = inlined_call_operand.vmem [shape: f32[64,32], index: 0, kind: input, shape index: {}]
  %s1 = inlined_call_operand.hbm [shape: f32[8,32], index: 1, kind: output, shape index: {}]
  %s2 = sld [smem:[#allocation0]]
  $region10: #{_pos_emb_call.1} parent=0
    _
  %s4 = ssub.s32 1, %s2
  %s5 = scalar_select 0, %s4, %s2
  %p6 = scmp.eq.s32.totalorder 0, 0
  // Predicated region
  $region2: #{_pos_emb_call.1} parent=0 // pred_check
    %p7 = pneg %p6
  $region3: #{_pos_emb_call.1} parent=0 // pred_check_branch
    %9 = sbr.rel (%p7) target = $region5
  $region4: #{_pos_emb_call.1} parent=0 // pred_region
    // Predicated region
    $region6: #{_pos_emb_call.1} parent=4 // pred_check
      _
    $region7: #{_pos_emb_call.1} parent=4 // pred_check_branch
      %11 = sbr.rel target = $region9
    $region8: #{_pos_emb_call.1} parent=4 // pred_region
      %12 = sst [smem:[#allocation5]] [#allocation4]
      %13 = sst [smem:[#allocation6]] [#allocation3]
    $region9: #{_pos_emb_call.1} parent=4 // pred_fallthru
      _
    %15 = shalt.err (0)
    %s17 = sshll.u32 %s0, 4
    %s18 = int_to_ptr.vmem [resolvable:$true] %s17
    %20 = dma.vmem_to_hbm [thread:$0]  %s18, 128, %s1, [#allocation2]
    %s21 = smul.u32 8, 1
    %s22 = sshll.u32 %s21, 4
    %23 = dma.done [#allocation2], %s22
  $region5: #{_pos_emb_call.1} parent=0 // pred_fallthru
    _
  %24 = vsyncmov [#allocation2]
  %s25 = vpop.sfrf %24
  %p26 = scmp.eq.s32.totalorder %s25, 0
  %p27 = pneg %p26
  %29 = shalt.err (%p27)

</llo_original>
